<compile_context>
chip_gen: v7x
topology: tpu7x:2x2x1
jax: 0.10.0
libtpu: 0.0.40
codegen_flags: <defaults>
</compile_context>

<pallas_src>
import functools

import jax
import jax.numpy as jnp
from jax.experimental import pallas as pl
from jax.experimental.pallas import tpu as pltpu


def _round_up(x, m):
    return ((x + m - 1) // m) * m


def _vmem_cap_bytes():
    """Per-generation VMEM cap; leave ~25% headroom for compiler scratch."""
    try:
        cap = int(pltpu.get_tpu_info().vmem_capacity_bytes)
        return max(4 * 1024 * 1024, (cap * 3) // 4)   # ~48 MiB v7x, ~96 MiB v6e/v5e
    except Exception:
        return 48 * 1024 * 1024                       # safe on every generation


# ---------------------------------------------------------------------------
# Pallas kernel: fully fused GRUCell step on one batch tile.
# ---------------------------------------------------------------------------
def _gru_cell_kernel(a_ref, w_ref, out_ref, *, hp, x_cols):
    """a_ref: [TB, K] bf16 (A = [x | 1 | pad | h | pad]); w_ref: [K, 4*hp] bf16;
    out_ref: [TB, hp] f32."""
    a = a_ref[...]
    # Single MXU matmul; all biases are folded into W via the ones column of A.
    g = jnp.dot(a, w_ref[...], preferred_element_type=jnp.float32)

    r_pre = g[:, 0 * hp:1 * hp]          # i_r + h_r + b_ir + b_hr
    z_pre = g[:, 1 * hp:2 * hp]          # i_z + h_z + b_iz + b_hz
    n_sum = g[:, 2 * hp:3 * hp]          # i_n + b_in + h_n + b_hn
    h_n = g[:, 3 * hp:4 * hp]            # h @ W_hn^T + b_hn

    # h read straight from the lane-aligned tail of A (no identity block).
    h = a[:, x_cols:].astype(jnp.float32)

    # sigmoid(x) = 0.5 * tanh(0.5 * x) + 0.5  -> one EUP push per gate.
    r = 0.5 * jnp.tanh(0.5 * r_pre) + 0.5
    z = 0.5 * jnp.tanh(0.5 * z_pre) + 0.5
    # i_n + r * h_n == n_sum + (r - 1) * h_n
    n = jnp.tanh(n_sum + (r - 1.0) * h_n)

    # (1 - z) * n + z * h  ==  n + z * (h - n)
    out_ref[...] = (n + z * (h - n)).astype(out_ref.dtype)


def gru_cell_pallas(a, w_packed, *, hidden_pad, x_cols, block_b):
    """A: [B_pad, K] bf16 with B_pad % block_b == 0 -> [B_pad, hidden_pad] f32."""
    b_pad, k = a.shape
    hp = hidden_pad
    grid = (b_pad // block_b,)

    # VMEM budget: double-buffered A/out tiles, single-buffered bf16 weights,
    # plus f32 epilogue temporaries.
    est_bytes = (2 * block_b * k * 2          # A tiles (bf16, 2 buffers)
                 + k * 4 * hp * 2             # resident W (bf16, 1 buffer)
                 + 2 * block_b * hp * 4       # out tiles (f32, 2 buffers)
                 + 2 * block_b * 4 * hp * 4)  # g + epilogue temps (f32)
    vmem_limit = int(max(4 * 1024 * 1024, min(_vmem_cap_bytes(), 2 * est_bytes)))

    cost = pl.CostEstimate(
        flops=2 * b_pad * k * 4 * hp + 10 * b_pad * hp,
        transcendentals=3 * b_pad * hp,
        bytes_accessed=2 * (a.size + w_packed.size) + 4 * b_pad * hp,
    )

    return pl.pallas_call(
        functools.partial(_gru_cell_kernel, hp=hp, x_cols=x_cols),
        out_shape=jax.ShapeDtypeStruct((b_pad, hp), jnp.float32),
        grid=grid,
        in_specs=[
            # Batch-tiled, double-buffered activations.
            pl.BlockSpec((block_b, k), lambda i: (i, 0)),
            # Resident packed weights: constant index_map -> single-buffer.
            pl.BlockSpec((k, 4 * hp), lambda i: (0, 0),
                         pipeline_mode=pl.Buffered(1)),
        ],
        out_specs=pl.BlockSpec((block_b, hp), lambda i: (i, 0)),
        compiler_params=pltpu.CompilerParams(
            dimension_semantics=("parallel",),
            vmem_limit_bytes=vmem_limit,
        ),
        cost_estimate=cost,
    )(a, w_packed)


# ---------------------------------------------------------------------------
# Python glue reproducing the TensorDict machinery (no torch).
# ---------------------------------------------------------------------------
class GRUCellModule:
    """Deterministically-initialized GRUCell whose forward runs in Pallas."""

    MAX_BLOCK_B = 512  # batch tile rows (multiple of 8 sublanes)

    def __init__(self, input_size, hidden_size, key):
        self.input_size = input_size
        self.hidden_size = hidden_size
        din, h = input_size, hidden_size
        bound = 1.0 / jnp.sqrt(hidden_size)
        k1, k2, k3, k4 = jax.random.split(key, 4)
        # Canonical PyTorch-layout parameters (kept for reference checking).
        self.weight_ih = jax.random.uniform(
            k1, (3 * h, din), jnp.float32, -bound, bound)
        self.weight_hh = jax.random.uniform(
            k2, (3 * h, h), jnp.float32, -bound, bound)
        self.bias_ih = jax.random.uniform(k3, (3 * h,), jnp.float32, -bound, bound)
        self.bias_hh = jax.random.uniform(k4, (3 * h,), jnp.float32, -bound, bound)

        # ---- pack once; hoisted out of the per-call hot path ----
        hp = _round_up(h, 128)
        x_cols = _round_up(din + 1, 128)   # +1 guarantees a free "ones" column
        k_dim = x_cols + hp
        wih_t = self.weight_ih.T           # [Din, 3H]
        whh_t = self.weight_hh.T           # [H,   3H]

        w = jnp.zeros((k_dim, 4 * hp), jnp.float32)
        for g in range(3):  # blocks 0..2: gate pre-activation sums (+ biases)
            w = w.at[:din, g * hp:g * hp + h].set(wih_t[:, g * h:(g + 1) * h])
            w = w.at[x_cols:x_cols + h, g * hp:g * hp + h].set(
                whh_t[:, g * h:(g + 1) * h])
            # bias row, hit by the ones column of A (index `din`)
            w = w.at[din, g * hp:g * hp + h].set(
                self.bias_ih[g * h:(g + 1) * h] + self.bias_hh[g * h:(g + 1) * h])
        # block 3: h_n = h @ W_hn^T + b_hn (x rows stay zero)
        w = w.at[x_cols:x_cols + h, 3 * hp:3 * hp + h].set(whh_t[:, 2 * h:3 * h])
        w = w.at[din, 3 * hp:3 * hp + h].set(self.bias_hh[2 * h:3 * h])

        self.hidden_pad = hp
        self.x_cols = x_cols
        # bf16 weights: f32 MXU is emulated on v5e; halves VMEM/DMA on v6e/v7x.
        self.w_packed = w.astype(jnp.bfloat16)

    def _pick_block_b(self, b8):
        """Largest tile <= MAX_BLOCK_B minimizing padded-row waste."""
        if b8 <= self.MAX_BLOCK_B:
            return b8
        best_key, best_c = None, 8
        for c in range(8, self.MAX_BLOCK_B + 1, 8):
            padded = _round_up(b8, c)
            key = (padded - b8, padded // c)   # (waste, num grid steps)
            if best_key is None or key < best_key:
                best_key, best_c = key, c
        return best_c

    def __call__(self, x, h):
        batch = x.shape[0]
        b8 = _round_up(batch, 8)
        block_b = self._pick_block_b(b8)
        b_pad = _round_up(b8, block_b)
        k_dim = self.x_cols + self.hidden_pad

        # Build A = [x | 1 | 0-pad | h | 0-pad]; padded rows stay finite.
        a = jnp.zeros((b_pad, k_dim), jnp.float32)
        a = a.at[:batch, :self.input_size].set(x.astype(jnp.float32))
        a = a.at[:, self.input_size].set(1.0)          # bias "ones" column
        a = a.at[:batch, self.x_cols:self.x_cols + self.hidden_size].set(
            h.astype(jnp.float32))
        a = a.astype(jnp.bfloat16)

        out = gru_cell_pallas(a, self.w_packed, hidden_pad=self.hidden_pad,
                              x_cols=self.x_cols, block_b=block_b)
        return out[:batch, :self.hidden_size]


class TensorDictModule:
    """Reads `in_keys` from a dict, calls the module, writes `out_keys`."""

    def __init__(self, module, in_keys, out_keys):
        self.module = module
        self.in_keys = list(in_keys)
        self.out_keys = list(out_keys)

    def forward(self, tensordict, tensordict_out=None, **kwargs):
        tensors = tuple(tensordict.get(k, None) for k in self.in_keys)
        out = self.module(*tensors, **kwargs)
        if not isinstance(out, tuple):
            out = (out,)
        if tensordict_out is None:
            tensordict_out = tensordict
        for key, tensor in zip(self.out_keys, out):
            if key != "_":
                tensordict_out[key] = tensor
        return tensordict_out

    __call__ = forward


class TensorDictModuleWrapper:
    """Behaves exactly as the wrapped TensorDictModule; forward delegates."""

    def __init__(self, td_module):
        self.td_module = td_module
        # TODO(synk): torch forward-hook re-registration has no JAX equivalent.

    def __getattr__(self, name):
        if name not in self.__dict__ and not name.startswith("__"):
            return getattr(self.__dict__["td_module"], name)
        raise AttributeError(
            f"attribute {name} not recognised in {type(self).__name__}")

    def forward(self, *args, **kwargs):
        return self.td_module.forward(*args, **kwargs)

    __call__ = forward


# ---------------------------------------------------------------------------
# Pure-JAX reference for correctness check (PyTorch GRUCell semantics).
# ---------------------------------------------------------------------------
def gru_cell_ref(x, h, w_ih, w_hh, b_ih, b_hh):
    gi = x @ w_ih.T + b_ih
    gh = h @ w_hh.T + b_hh
    hdim = h.shape[-1]
    i_r, i_z, i_n = gi[:, :hdim], gi[:, hdim:2 * hdim], gi[:, 2 * hdim:]
    h_r, h_z, h_n = gh[:, :hdim], gh[:, hdim:2 * hdim], gh[:, 2 * hdim:]
    r = jax.nn.sigmoid(i_r + h_r)
    z = jax.nn.sigmoid(i_z + h_z)
    n = jnp.tanh(i_n + r * h_n)
    return (1.0 - z) * n + z * h


if __name__ == "__main__":
    key = jax.random.PRNGKey(0)
    k_params, k_x, k_h = jax.random.split(key, 3)

    batch, input_size, hidden_size = 3, 4, 8   # matches docstring example

    cell = GRUCellModule(input_size, hidden_size, k_params)
    td_module = TensorDictModule(cell, in_keys=["input", "hidden"],
                                 out_keys=["output"])
    wrapper = TensorDictModuleWrapper(td_module)

    td = {
        "input": jax.random.normal(k_x, (batch, input_size), jnp.float32),
        "hidden": jax.random.normal(k_h, (batch, hidden_size), jnp.float32),
    }

    td_out = wrapper(td)
    out = td_out["output"]
    jax.block_until_ready(out)

    ref = gru_cell_ref(td["input"], td["hidden"], cell.weight_ih,
                       cell.weight_hh, cell.bias_ih, cell.bias_hh)
    assert out.shape == (batch, hidden_size)
    assert out.dtype == jnp.float32
    # bf16 weights/activations with f32 accumulation -> relaxed tolerance.
    assert jnp.allclose(out, ref, atol=2e-2, rtol=2e-2), (
        f"max abs err {jnp.max(jnp.abs(out - ref))}")

    print("KERNEL_OK")
</pallas_src>

<mosaic_0001>
module attributes {stable_mosaic.version = 11 : i64} {
  func.func @_gru_cell_kernel(%arg0: i32, %arg1: memref<8x256xbf16, #tpu.memory_space<vmem>>, %arg2: memref<256x512xbf16, #tpu.memory_space<vmem>>, %arg3: memref<8x128xf32, #tpu.memory_space<vmem>>) attributes {dimension_semantics = [#tpu.dimension_semantics<parallel>], iteration_bounds = array<i64: 1>, scalar_prefetch = 0 : i64, scratch_operands = 0 : i64, tpu.core_type = #tpu.core_type<tc>, window_params = [{transform_indices = @transform_0, window_bounds = array<i64: 8, 256>}, {pipeline_mode = #tpu.pipeline_mode<synchronous>, transform_indices = @transform_1, window_bounds = array<i64: 256, 512>}, {transform_indices = @transform_2, window_bounds = array<i64: 8, 128>}]} {
    %c0 = arith.constant 0 : index
    %c0_0 = arith.constant 0 : index
    %0 = vector.load %arg1[%c0, %c0_0] : memref<8x256xbf16, #tpu.memory_space<vmem>>, vector<8x256xbf16>
    %c0_1 = arith.constant 0 : index
    %c0_2 = arith.constant 0 : index
    %1 = vector.load %arg2[%c0_1, %c0_2] : memref<256x512xbf16, #tpu.memory_space<vmem>>, vector<256x512xbf16>
    %cst = arith.constant dense<0.000000e+00> : vector<8x512xf32>
    %2 = tpu.matmul %0, %1, %cst {dimension_numbers = #tpu.dot_dimension_numbers<[1], [0], [0], [1], [0, 0, 1, 1], [], []>} : vector<8x256xbf16>, vector<256x512xbf16>, vector<8x512xf32> -> vector<8x512xf32>
    %3 = vector.extract_strided_slice %2 {offsets = [0, 0], sizes = [8, 128], strides = [1, 1]} : vector<8x512xf32> to vector<8x128xf32>
    %4 = vector.extract_strided_slice %2 {offsets = [0, 128], sizes = [8, 128], strides = [1, 1]} : vector<8x512xf32> to vector<8x128xf32>
    %5 = vector.extract_strided_slice %2 {offsets = [0, 256], sizes = [8, 128], strides = [1, 1]} : vector<8x512xf32> to vector<8x128xf32>
    %6 = vector.extract_strided_slice %2 {offsets = [0, 384], sizes = [8, 128], strides = [1, 1]} : vector<8x512xf32> to vector<8x128xf32>
    %7 = vector.extract_strided_slice %0 {offsets = [0, 128], sizes = [8, 128], strides = [1, 1]} : vector<8x256xbf16> to vector<8x128xbf16>
    %8 = arith.extf %7 : vector<8x128xbf16> to vector<8x128xf32>
    %cst_3 = arith.constant 5.000000e-01 : f32
    %9 = vector.broadcast %cst_3 : f32 to vector<8x128xf32>
    %10 = arith.mulf %9, %3 : vector<8x128xf32>
    %11 = math.tanh %10 : vector<8x128xf32>
    %cst_4 = arith.constant 5.000000e-01 : f32
    %12 = vector.broadcast %cst_4 : f32 to vector<8x128xf32>
    %13 = arith.mulf %12, %11 : vector<8x128xf32>
    %cst_5 = arith.constant 5.000000e-01 : f32
    %14 = vector.broadcast %cst_5 : f32 to vector<8x128xf32>
    %15 = arith.addf %13, %14 : vector<8x128xf32>
    %cst_6 = arith.constant 5.000000e-01 : f32
    %16 = vector.broadcast %cst_6 : f32 to vector<8x128xf32>
    %17 = arith.mulf %16, %4 : vector<8x128xf32>
    %18 = math.tanh %17 : vector<8x128xf32>
    %cst_7 = arith.constant 5.000000e-01 : f32
    %19 = vector.broadcast %cst_7 : f32 to vector<8x128xf32>
    %20 = arith.mulf %19, %18 : vector<8x128xf32>
    %cst_8 = arith.constant 5.000000e-01 : f32
    %21 = vector.broadcast %cst_8 : f32 to vector<8x128xf32>
    %22 = arith.addf %20, %21 : vector<8x128xf32>
    %cst_9 = arith.constant 1.000000e+00 : f32
    %23 = vector.broadcast %cst_9 : f32 to vector<8x128xf32>
    %24 = arith.subf %15, %23 : vector<8x128xf32>
    %25 = arith.mulf %24, %6 : vector<8x128xf32>
    %26 = arith.addf %5, %25 : vector<8x128xf32>
    %27 = math.tanh %26 : vector<8x128xf32>
    %28 = arith.subf %8, %27 : vector<8x128xf32>
    %29 = arith.mulf %22, %28 : vector<8x128xf32>
    %30 = arith.addf %27, %29 : vector<8x128xf32>
    %c0_10 = arith.constant 0 : index
    %c0_11 = arith.constant 0 : index
    %31 = vector.load %arg3[%c0_10, %c0_11] : memref<8x128xf32, #tpu.memory_space<vmem>>, vector<8x128xf32>
    tpu.vector_store %arg3[%c0_10, %c0_11], %30 {strides = array<i32>} : memref<8x128xf32, #tpu.memory_space<vmem>>, vector<8x128xf32>,
    return
  }
  func.func @transform_0(%arg0: i32) -> (i32, i32) {
    %c0_i32 = arith.constant 0 : i32
    %c0_i32_0 = arith.constant 0 : i32
    return %arg0, %c0_i32 : i32, i32
  }
  func.func @transform_1(%arg0: i32) -> (i32, i32) {
    %c0_i32 = arith.constant 0 : i32
    %c0_i32_0 = arith.constant 0 : i32
    %c0_i32_1 = arith.constant 0 : i32
    return %c0_i32, %c0_i32_0 : i32, i32
  }
  func.func @transform_2(%arg0: i32) -> (i32, i32) {
    %c0_i32 = arith.constant 0 : i32
    %c0_i32_0 = arith.constant 0 : i32
    return %arg0, %c0_i32 : i32, i32
  }
}

</mosaic_0001>

<llo_original>
// kernel: tpu_custom_call.1
$region0: #{tpu_custom_call.1}
  #allocation0 [shape = 'u32[]', space=smem, size = 0x4, offset = 0x4, fixed_abs, tag = 'smem constant byte address 0x4 - core index']
  #allocation1 [shape = 'u32[144,128]{1,0:T(1,128)}', space=vmem, size = 0x12000, scoped, tag = 'internal scratch']
  %s0 = inlined_call_operand.hbm [shape: bf16[8,256], index: 0, kind: input, shape index: {}]
  %s1 = inlined_call_operand.hbm [shape: bf16[256,512], index: 1, kind: input, shape index: {}]
  %s2 = inlined_call_operand.hbm [shape: f32[8,128], index: 2, kind: output, shape index: {}]
  %s3 = sld [smem:[#allocation0]]
  $region26: #{tpu_custom_call.1} parent=0
    _
  %s5 = ssub.s32 1, %s3
  %s6 = scalar_select 0, %s5, %s3
  $region1: #{tpu_custom_call.1} parent=0
    #allocation2 [shape = 'u8[4096]{0}', space=vmem, size = 0x1000, scoped, tag = 'input window, operand 0, single buffered']
    #allocation3 [shape = 's32[1]{0}', space=sflag, size = 0x4, scoped, tag = 'scoped memory for tpu_custom_call.1']
    #allocation4 [shape = 's32[1]{0}', space=sflag, size = 0x4, scoped, tag = 'scoped memory for tpu_custom_call.1']
    #allocation5 [shape = 'u8[262144]{0}', space=vmem, size = 0x40000, scoped, tag = 'input window, operand 1, single buffered']
    #allocation6 [shape = 's32[1]{0}', space=sflag, size = 0x4, scoped, tag = 'scoped memory for tpu_custom_call.1']
    #allocation7 [shape = 'u8[4096]{0}', space=vmem, size = 0x1000, scoped, tag = 'output window, operand 0, single buffered']
    %7 = vsyncpa [#allocation3], 0
    %8 = vsyncpa [#allocation6], 0
    %9 = vsyncpa [#allocation4], 0
    // Predicated region
    $region2: #{tpu_custom_call.1} parent=1 // pred_check
      _
    $region3: #{tpu_custom_call.1} parent=1 // pred_check_branch
      %11 = sbr.rel (0) target = $region5
    $region4: #{tpu_custom_call.1} parent=1 // pred_region
      %s13 = ssub.s32 128, 128
      %14 = vsyncadd [#allocation3], %s13
      %s16 = sshll.u32 [#allocation2], 4
      %s17 = int_to_ptr.vmem [resolvable:$true] %s16
      %19 = dma.hbm_to_vmem [thread:$0]  %s0, 128, %s17, [#allocation3]
    $region5: #{tpu_custom_call.1} parent=1 // pred_fallthru
      _
    // Predicated region
    $region6: #{tpu_custom_call.1} parent=1 // pred_check
      _
    $region7: #{tpu_custom_call.1} parent=1 // pred_check_branch
      %21 = sbr.rel (0) target = $region9
    $region8: #{tpu_custom_call.1} parent=1 // pred_region
      %s23 = ssub.s32 8192, 8192
      %24 = vsyncadd [#allocation6], %s23
      %s25 = sshll.u32 [#allocation5], 4
      %s26 = int_to_ptr.vmem [resolvable:$true] %s25
      %31 = dma.hbm_to_vmem [thread:$0]  %s1, 8192, %s26, [#allocation6], 256, 256, 16
    $region9: #{tpu_custom_call.1} parent=1 // pred_fallthru
      _
    // Predicated region
    $region10: #{tpu_custom_call.1} parent=1 // pred_check
      _
    $region11: #{tpu_custom_call.1} parent=1 // pred_check_branch
      %33 = sbr.rel (0) target = $region13
    $region12: #{tpu_custom_call.1} parent=1 // pred_region
      %34 = dma.done [#allocation3], 128
    $region13: #{tpu_custom_call.1} parent=1 // pred_fallthru
      _
    // Predicated region
    $region14: #{tpu_custom_call.1} parent=1 // pred_check
      _
    $region15: #{tpu_custom_call.1} parent=1 // pred_check_branch
      %36 = sbr.rel (0) target = $region17
    $region16: #{tpu_custom_call.1} parent=1 // pred_region
      %37 = dma.done [#allocation6], 8192
    $region17: #{tpu_custom_call.1} parent=1 // pred_fallthru
      _
    %v38 = vld [vmem:[#allocation2] sm:$0xff]
    %v39 = vld [vmem:[#allocation5] sm:$0xff]
    %v40 = vld [vmem:[#allocation5 + $0x8] sm:$0xff]
    %v41 = vld [vmem:[#allocation5 + $0x10] sm:$0xff]
    %v42 = vld [vmem:[#allocation5 + $0x18] sm:$0xff]
    %v43 = vld [vmem:[#allocation5 + $0x20] sm:$0xff]
    %v44 = vld [vmem:[#allocation5 + $0x28] sm:$0xff]
    %v45 = vld [vmem:[#allocation5 + $0x30] sm:$0xff]
    %v46 = vld [vmem:[#allocation5 + $0x38] sm:$0xff]
    %v47 = vld [vmem:[#allocation5 + $0x40] sm:$0xff]
    %v48 = vld [vmem:[#allocation5 + $0x48] sm:$0xff]
    %v49 = vld [vmem:[#allocation5 + $0x50] sm:$0xff]
    %v50 = vld [vmem:[#allocation5 + $0x58] sm:$0xff]
    %v51 = vld [vmem:[#allocation5 + $0x60] sm:$0xff]
    %v52 = vld [vmem:[#allocation5 + $0x68] sm:$0xff]
    %v53 = vld [vmem:[#allocation5 + $0x70] sm:$0xff]
    %v54 = vld [vmem:[#allocation5 + $0x78] sm:$0xff]
    %v55 = vld [vmem:[#allocation5 + $0x80] sm:$0xff]
    %v56 = vld [vmem:[#allocation5 + $0x88] sm:$0xff]
    %v57 = vld [vmem:[#allocation5 + $0x90] sm:$0xff]
    %v58 = vld [vmem:[#allocation5 + $0x98] sm:$0xff]
    %v59 = vld [vmem:[#allocation5 + $0xa0] sm:$0xff]
    %v60 = vld [vmem:[#allocation5 + $0xa8] sm:$0xff]
    %v61 = vld [vmem:[#allocation5 + $0xb0] sm:$0xff]
    %v62 = vld [vmem:[#allocation5 + $0xb8] sm:$0xff]
    %v63 = vld [vmem:[#allocation5 + $0xc0] sm:$0xff]
    %v64 = vld [vmem:[#allocation5 + $0xc8] sm:$0xff]
    %v65 = vld [vmem:[#allocation5 + $0xd0] sm:$0xff]
    %v66 = vld [vmem:[#allocation5 + $0xd8] sm:$0xff]
    %v67 = vld [vmem:[#allocation5 + $0xe0] sm:$0xff]
    %v68 = vld [vmem:[#allocation5 + $0xe8] sm:$0xff]
    %v69 = vld [vmem:[#allocation5 + $0xf0] sm:$0xff]
    %v70 = vld [vmem:[#allocation5 + $0xf8] sm:$0xff]
    %v71 = vld [vmem:[#allocation5 + $0x100] sm:$0xff]
    %v72 = vld [vmem:[#allocation5 + $0x108] sm:$0xff]
    %v73 = vld [vmem:[#allocation5 + $0x110] sm:$0xff]
    %v74 = vld [vmem:[#allocation5 + $0x118] sm:$0xff]
    %v75 = vld [vmem:[#allocation5 + $0x120] sm:$0xff]
    %v76 = vld [vmem:[#allocation5 + $0x128] sm:$0xff]
    %v77 = vld [vmem:[#allocation5 + $0x130] sm:$0xff]
    %v78 = vld [vmem:[#allocation5 + $0x138] sm:$0xff]
    %v79 = vld [vmem:[#allocation5 + $0x140] sm:$0xff]
    %v80 = vld [vmem:[#allocation5 + $0x148] sm:$0xff]
    %v81 = vld [vmem:[#allocation5 + $0x150] sm:$0xff]
    %v82 = vld [vmem:[#allocation5 + $0x158] sm:$0xff]
    %v83 = vld [vmem:[#allocation5 + $0x160] sm:$0xff]
    %v84 = vld [vmem:[#allocation5 + $0x168] sm:$0xff]
    %v85 = vld [vmem:[#allocation5 + $0x170] sm:$0xff]
    %v86 = vld [vmem:[#allocation5 + $0x178] sm:$0xff]
    %v87 = vld [vmem:[#allocation5 + $0x180] sm:$0xff]
    %v88 = vld [vmem:[#allocation5 + $0x188] sm:$0xff]
    %v89 = vld [vmem:[#allocation5 + $0x190] sm:$0xff]
    %v90 = vld [vmem:[#allocation5 + $0x198] sm:$0xff]
    %v91 = vld [vmem:[#allocation5 + $0x1a0] sm:$0xff]
    %v92 = vld [vmem:[#allocation5 + $0x1a8] sm:$0xff]
    %v93 = vld [vmem:[#allocation5 + $0x1b0] sm:$0xff]
    %v94 = vld [vmem:[#allocation5 + $0x1b8] sm:$0xff]
    %v95 = vld [vmem:[#allocation5 + $0x1c0] sm:$0xff]
    %v96 = vld [vmem:[#allocation5 + $0x1c8] sm:$0xff]
    %v97 = vld [vmem:[#allocation5 + $0x1d0] sm:$0xff]
    %v98 = vld [vmem:[#allocation5 + $0x1d8] sm:$0xff]
    %v99 = vld [vmem:[#allocation5 + $0x1e0] sm:$0xff]
    %v100 = vld [vmem:[#allocation5 + $0x1e8] sm:$0xff]
    %v101 = vld [vmem:[#allocation5 + $0x1f0] sm:$0xff]
    %v102 = vld [vmem:[#allocation5 + $0x1f8] sm:$0xff]
    %v104 = vunpack.c.l.b16 %v38
    %v105 = vunpack.c.h.b16 %v38
    %v106 = vpack.c.b16 %v104, %v104
    %v107 = vpack.c.b16 %v105, %v105
    %v174 = vunpack.c.l.b16 %v39
    %v175 = vunpack.c.h.b16 %v39
    %v176 = vunpack.c.l.b16 %v40
    %v177 = vunpack.c.h.b16 %v40
    %v178 = vunpack.c.l.b16 %v41
    %v179 = vunpack.c.h.b16 %v41
    %v180 = vunpack.c.l.b16 %v42
    %v181 = vunpack.c.h.b16 %v42
    %v182 = vunpack.c.l.b16 %v43
    %v183 = vunpack.c.h.b16 %v43
    %v184 = vunpack.c.l.b16 %v44
    %v185 = vunpack.c.h.b16 %v44
    %v186 = vunpack.c.l.b16 %v45
    %v187 = vunpack.c.h.b16 %v45
    %v188 = vunpack.c.l.b16 %v46
    %v189 = vunpack.c.h.b16 %v46
    %v190 = vunpack.c.l.b16 %v47
    %v191 = vunpack.c.h.b16 %v47
    %v192 = vunpack.c.l.b16 %v48
    %v193 = vunpack.c.h.b16 %v48
    %v194 = vunpack.c.l.b16 %v49
    %v195 = vunpack.c.h.b16 %v49
    %v196 = vunpack.c.l.b16 %v50
    %v197 = vunpack.c.h.b16 %v50
    %v198 = vunpack.c.l.b16 %v51
    %v199 = vunpack.c.h.b16 %v51
    %v200 = vunpack.c.l.b16 %v52
    %v201 = vunpack.c.h.b16 %v52
    %v202 = vunpack.c.l.b16 %v53
    %v203 = vunpack.c.h.b16 %v53
    %v204 = vunpack.c.l.b16 %v54
    %v205 = vunpack.c.h.b16 %v54
    %v206 = vunpack.c.l.b16 %v55
    %v207 = vunpack.c.h.b16 %v55
    %v208 = vunpack.c.l.b16 %v56
    %v209 = vunpack.c.h.b16 %v56
    %v210 = vunpack.c.l.b16 %v57
    %v211 = vunpack.c.h.b16 %v57
    %v212 = vunpack.c.l.b16 %v58
    %v213 = vunpack.c.h.b16 %v58
    %v214 = vunpack.c.l.b16 %v59
    %v215 = vunpack.c.h.b16 %v59
    %v216 = vunpack.c.l.b16 %v60
    %v217 = vunpack.c.h.b16 %v60
    %v218 = vunpack.c.l.b16 %v61
    %v219 = vunpack.c.h.b16 %v61
    %v220 = vunpack.c.l.b16 %v62
    %v221 = vunpack.c.h.b16 %v62
    %v222 = vunpack.c.l.b16 %v63
    %v223 = vunpack.c.h.b16 %v63
    %v224 = vunpack.c.l.b16 %v64
    %v225 = vunpack.c.h.b16 %v64
    %v226 = vunpack.c.l.b16 %v65
    %v227 = vunpack.c.h.b16 %v65
    %v228 = vunpack.c.l.b16 %v66
    %v229 = vunpack.c.h.b16 %v66
    %v230 = vunpack.c.l.b16 %v67
    %v231 = vunpack.c.h.b16 %v67
    %v232 = vunpack.c.l.b16 %v68
    %v233 = vunpack.c.h.b16 %v68
    %v234 = vunpack.c.l.b16 %v69
    %v235 = vunpack.c.h.b16 %v69
    %v236 = vunpack.c.l.b16 %v70
    %v237 = vunpack.c.h.b16 %v70
    %v238 = vunpack.c.l.b16 %v71
    %v239 = vunpack.c.h.b16 %v71
    %v240 = vunpack.c.l.b16 %v72
    %v241 = vunpack.c.h.b16 %v72
    %v242 = vunpack.c.l.b16 %v73
    %v243 = vunpack.c.h.b16 %v73
    %v244 = vunpack.c.l.b16 %v74
    %v245 = vunpack.c.h.b16 %v74
    %v246 = vunpack.c.l.b16 %v75
    %v247 = vunpack.c.h.b16 %v75
    %v248 = vunpack.c.l.b16 %v76
    %v249 = vunpack.c.h.b16 %v76
    %v250 = vunpack.c.l.b16 %v77
    %v251 = vunpack.c.h.b16 %v77
    %v252 = vunpack.c.l.b16 %v78
    %v253 = vunpack.c.h.b16 %v78
    %v254 = vunpack.c.l.b16 %v79
    %v255 = vunpack.c.h.b16 %v79
    %v256 = vunpack.c.l.b16 %v80
    %v257 = vunpack.c.h.b16 %v80
    %v258 = vunpack.c.l.b16 %v81
    %v259 = vunpack.c.h.b16 %v81
    %v260 = vunpack.c.l.b16 %v82
    %v261 = vunpack.c.h.b16 %v82
    %v262 = vunpack.c.l.b16 %v83
    %v263 = vunpack.c.h.b16 %v83
    %v264 = vunpack.c.l.b16 %v84
    %v265 = vunpack.c.h.b16 %v84
    %v266 = vunpack.c.l.b16 %v85
    %v267 = vunpack.c.h.b16 %v85
    %v268 = vunpack.c.l.b16 %v86
    %v269 = vunpack.c.h.b16 %v86
    %v270 = vunpack.c.l.b16 %v87
    %v271 = vunpack.c.h.b16 %v87
    %v272 = vunpack.c.l.b16 %v88
    %v273 = vunpack.c.h.b16 %v88
    %v274 = vunpack.c.l.b16 %v89
    %v275 = vunpack.c.h.b16 %v89
    %v276 = vunpack.c.l.b16 %v90
    %v277 = vunpack.c.h.b16 %v90
    %v278 = vunpack.c.l.b16 %v91
    %v279 = vunpack.c.h.b16 %v91
    %v280 = vunpack.c.l.b16 %v92
    %v281 = vunpack.c.h.b16 %v92
    %v282 = vunpack.c.l.b16 %v93
    %v283 = vunpack.c.h.b16 %v93
    %v284 = vunpack.c.l.b16 %v94
    %v285 = vunpack.c.h.b16 %v94
    %v286 = vunpack.c.l.b16 %v95
    %v287 = vunpack.c.h.b16 %v95
    %v288 = vunpack.c.l.b16 %v96
    %v289 = vunpack.c.h.b16 %v96
    %v290 = vunpack.c.l.b16 %v97
    %v291 = vunpack.c.h.b16 %v97
    %v292 = vunpack.c.l.b16 %v98
    %v293 = vunpack.c.h.b16 %v98
    %v294 = vunpack.c.l.b16 %v99
    %v295 = vunpack.c.h.b16 %v99
    %v296 = vunpack.c.l.b16 %v100
    %v297 = vunpack.c.h.b16 %v100
    %v298 = vunpack.c.l.b16 %v101
    %v299 = vunpack.c.h.b16 %v101
    %v300 = vunpack.c.l.b16 %v102
    %v301 = vunpack.c.h.b16 %v102
    %v302 = vpack.c.b16 %v178, %v174
    %v303 = vpack.c.b16 %v179, %v175
    %v304 = vpack.c.b16 %v180, %v176
    %v305 = vpack.c.b16 %v181, %v177
    %v306 = vpack.c.b16 %v186, %v182
    %v307 = vpack.c.b16 %v187, %v183
    %v308 = vpack.c.b16 %v188, %v184
    %v309 = vpack.c.b16 %v189, %v185
    %v310 = vpack.c.b16 %v194, %v190
    %v311 = vpack.c.b16 %v195, %v191
    %v312 = vpack.c.b16 %v196, %v192
    %v313 = vpack.c.b16 %v197, %v193
    %v314 = vpack.c.b16 %v202, %v198
    %v315 = vpack.c.b16 %v203, %v199
    %v316 = vpack.c.b16 %v204, %v200
    %v317 = vpack.c.b16 %v205, %v201
    %v318 = vpack.c.b16 %v210, %v206
    %v319 = vpack.c.b16 %v211, %v207
    %v320 = vpack.c.b16 %v212, %v208
    %v321 = vpack.c.b16 %v213, %v209
    %v322 = vpack.c.b16 %v218, %v214
    %v323 = vpack.c.b16 %v219, %v215
    %v324 = vpack.c.b16 %v220, %v216
    %v325 = vpack.c.b16 %v221, %v217
    %v326 = vpack.c.b16 %v226, %v222
    %v327 = vpack.c.b16 %v227, %v223
    %v328 = vpack.c.b16 %v228, %v224
    %v329 = vpack.c.b16 %v229, %v225
    %v330 = vpack.c.b16 %v234, %v230
    %v331 = vpack.c.b16 %v235, %v231
    %v332 = vpack.c.b16 %v236, %v232
    %v333 = vpack.c.b16 %v237, %v233
    %v334 = vpack.c.b16 %v242, %v238
    %v335 = vpack.c.b16 %v243, %v239
    %v336 = vpack.c.b16 %v244, %v240
    %v337 = vpack.c.b16 %v245, %v241
    %v338 = vpack.c.b16 %v250, %v246
    %v339 = vpack.c.b16 %v251, %v247
    %v340 = vpack.c.b16 %v252, %v248
    %v341 = vpack.c.b16 %v253, %v249
    %v342 = vpack.c.b16 %v258, %v254
    %v343 = vpack.c.b16 %v259, %v255
    %v344 = vpack.c.b16 %v260, %v256
    %v345 = vpack.c.b16 %v261, %v257
    %v346 = vpack.c.b16 %v266, %v262
    %v347 = vpack.c.b16 %v267, %v263
    %v348 = vpack.c.b16 %v268, %v264
    %v349 = vpack.c.b16 %v269, %v265
    %v350 = vpack.c.b16 %v274, %v270
    %v351 = vpack.c.b16 %v275, %v271
    %v352 = vpack.c.b16 %v276, %v272
    %v353 = vpack.c.b16 %v277, %v273
    %v354 = vpack.c.b16 %v282, %v278
    %v355 = vpack.c.b16 %v283, %v279
    %v356 = vpack.c.b16 %v284, %v280
    %v357 = vpack.c.b16 %v285, %v281
    %v358 = vpack.c.b16 %v290, %v286
    %v359 = vpack.c.b16 %v291, %v287
    %v360 = vpack.c.b16 %v292, %v288
    %v361 = vpack.c.b16 %v293, %v289
    %v362 = vpack.c.b16 %v298, %v294
    %v363 = vpack.c.b16 %v299, %v295
    %v364 = vpack.c.b16 %v300, %v296
    %v365 = vpack.c.b16 %v301, %v297
    %430 = vmatprep.subr.bf16.mxu0 %v303
    %431 = vmatpush1.bf16.msra.mxu0 %v302
    %432 = vmatprep.subr.bf16.mxu0 %v307
    %433 = vmatpush1.bf16.msra.mxu0 %v306
    %434 = vmatprep.subr.bf16.mxu0 %v311
    %435 = vmatpush1.bf16.msra.mxu0 %v310
    %436 = vmatprep.subr.bf16.mxu0 %v315
    %437 = vmatpush1.bf16.msra.mxu0 %v314
    %438 = vmatprep.subr.bf16.mxu0 %v319
    %439 = vmatpush1.bf16.msra.mxu0 %v318
    %440 = vmatprep.subr.bf16.mxu0 %v323
    %441 = vmatpush1.bf16.msra.mxu0 %v322
    %442 = vmatprep.subr.bf16.mxu0 %v327
    %443 = vmatpush1.bf16.msra.mxu0 %v326
    %444 = vmatprep.subr.bf16.mxu0 %v331
    %445 = vmatpush1.bf16.msra.mxu0 %v330
    %446 = vmatprep.subr.bf16.mxu0 %v335
    %447 = vmatpush1.bf16.msra.mxu0 %v334
    %448 = vmatprep.subr.bf16.mxu0 %v339
    %449 = vmatpush1.bf16.msra.mxu0 %v338
    %450 = vmatprep.subr.bf16.mxu0 %v343
    %451 = vmatpush1.bf16.msra.mxu0 %v342
    %452 = vmatprep.subr.bf16.mxu0 %v347
    %453 = vmatpush1.bf16.msra.mxu0 %v346
    %454 = vmatprep.subr.bf16.mxu0 %v351
    %455 = vmatpush1.bf16.msra.mxu0 %v350
    %456 = vmatprep.subr.bf16.mxu0 %v355
    %457 = vmatpush1.bf16.msra.mxu0 %v354
    %458 = vmatprep.subr.bf16.mxu0 %v359
    %459 = vmatpush1.bf16.msra.mxu0 %v358
    %460 = vmatprep.subr.bf16.mxu0 %v363
    %461 = vmatpush1.bf16.msra.mxu0 %v362
    %462 = vmatprep.mubr.bf16.mxu0 %v107
    %463 = vmatmul.mubr.bf16.gmra.mrb[0].mxu0 %v106
    %v464 = vpop.f32.mrb[0].mxu0
    %v465 = vadd.f32 0.0, %v464
    %v466 = vpop.f32.mrb[0].mxu0
    %v467 = vadd.f32 0.0, %v466
    %v468 = vpop.f32.mrb[0].mxu0
    %v469 = vpop.f32.mrb[0].mxu0
    %470 = vdwg.mxu0
    %471 = vmatprep.subr.bf16.mxu0 %v305
    %472 = vmatpush1.bf16.msra.mxu0 %v304
    %473 = vmatprep.subr.bf16.mxu0 %v309
    %474 = vmatpush1.bf16.msra.mxu0 %v308
    %475 = vmatprep.subr.bf16.mxu0 %v313
    %476 = vmatpush1.bf16.msra.mxu0 %v312
    %477 = vmatprep.subr.bf16.mxu0 %v317
    %478 = vmatpush1.bf16.msra.mxu0 %v316
    %479 = vmatprep.subr.bf16.mxu0 %v321
    %480 = vmatpush1.bf16.msra.mxu0 %v320
    %481 = vmatprep.subr.bf16.mxu0 %v325
    %482 = vmatpush1.bf16.msra.mxu0 %v324
    %483 = vmatprep.subr.bf16.mxu0 %v329
    %484 = vmatpush1.bf16.msra.mxu0 %v328
    %485 = vmatprep.subr.bf16.mxu0 %v333
    %486 = vmatpush1.bf16.msra.mxu0 %v332
    %487 = vmatprep.subr.bf16.mxu0 %v337
    %488 = vmatpush1.bf16.msra.mxu0 %v336
    %489 = vmatprep.subr.bf16.mxu0 %v341
    %490 = vmatpush1.bf16.msra.mxu0 %v340
    %491 = vmatprep.subr.bf16.mxu0 %v345
    %492 = vmatpush1.bf16.msra.mxu0 %v344
    %493 = vmatprep.subr.bf16.mxu0 %v349
    %494 = vmatpush1.bf16.msra.mxu0 %v348
    %495 = vmatprep.subr.bf16.mxu0 %v353
    %496 = vmatpush1.bf16.msra.mxu0 %v352
    %497 = vmatprep.subr.bf16.mxu0 %v357
    %498 = vmatpush1.bf16.msra.mxu0 %v356
    %499 = vmatprep.subr.bf16.mxu0 %v361
    %500 = vmatpush1.bf16.msra.mxu0 %v360
    %501 = vmatprep.subr.bf16.mxu0 %v365
    %502 = vmatpush1.bf16.msra.mxu0 %v364
    %503 = vmatprep.mubr.bf16.mxu0 %v107
    %504 = vmatmul.mubr.bf16.gmra.mrb[0].mxu0 %v106
    %v505 = vpop.f32.mrb[0].mxu0
    %v506 = vadd.f32 0.0, %v505
    %v507 = vpop.f32.mrb[0].mxu0
    %v508 = vadd.f32 0.0, %v507
    %v509 = vpop.f32.mrb[0].mxu0
    %v510 = vpop.f32.mrb[0].mxu0
    %511 = vdwg.mxu0
    %v512 = vrot.slane %v38, 4
    %v514 = vunpack.c.l.bf16 %v512
    %v515 = vmul.f32 %v465, 0.5
    %v516 = vtanh.pop %v515
    %v517 = vmul.f32 %v516, 0.5
    %v518 = vadd.f32 %v517, 0.5
    %v519 = vmul.f32 %v467, 0.5
    %v520 = vtanh.pop %v519
    %v521 = vmul.f32 %v520, 0.5
    %v522 = vadd.f32 %v521, 0.5
    %v523 = vsub.f32 %v518, 1.0
    %v524 = vmul.f32 %v523, %v508
    %v525 = vadd.f32 %v506, %v524
    %v526 = vtanh.pop %v525
    %v527 = vsub.f32 %v514, %v526
    %v528 = vmul.f32 %v522, %v527
    %v529 = vadd.f32 %v526, %v528
    %530 = vst [vmem:[#allocation7] sm:$0xff] %v529
    // Predicated region
    $region18: #{tpu_custom_call.1} parent=1 // pred_check
      _
    $region19: #{tpu_custom_call.1} parent=1 // pred_check_branch
      %532 = sbr.rel (0) target = $region21
    $region20: #{tpu_custom_call.1} parent=1 // pred_region
      %s534 = ssub.s32 128, 128
      %535 = vsyncadd [#allocation4], %s534
      %s537 = sshll.u32 [#allocation7], 4
      %s538 = int_to_ptr.vmem [resolvable:$true] %s537
      %540 = dma.vmem_to_hbm [thread:$0]  %s538, 128, %s2, [#allocation4]
    $region21: #{tpu_custom_call.1} parent=1 // pred_fallthru
      _
    // Predicated region
    $region22: #{tpu_custom_call.1} parent=1 // pred_check
      _
    $region23: #{tpu_custom_call.1} parent=1 // pred_check_branch
      %542 = sbr.rel (0) target = $region25
    $region24: #{tpu_custom_call.1} parent=1 // pred_region
      %543 = dma.done [#allocation4], 128
    $region25: #{tpu_custom_call.1} parent=1 // pred_fallthru
      _
    %544 = vsyncpa [#allocation3], 1
    %545 = vsyncpa [#allocation6], 1
    %546 = vsyncpa [#allocation4], 1

</llo_original>
